<compile_context>
chip_gen: v7x
topology: tpu7x:2x2x1
jax: 0.10.0
libtpu: 0.0.40
codegen_flags: <defaults>
</compile_context>

<pallas_src>
import jax
import jax.numpy as jnp
from jax import lax
from jax.experimental import pallas as pl
from jax.experimental.pallas import tpu as pltpu


def _make_kernel(NB, C, H, W, Wp, unroll):
    """Kernel body for one grid step covering NB batch elements.

    W  : real image width (columns >= W of the padded slab are zero).
    Wp : lane-padded width resident in VMEM (multiple of 128).
    """
    R = H // C                       # image rows per ".view(N, C, -1)" chunk
    f32 = jnp.float32
    padded = Wp > W

    def kernel(x_ref, t_ref, cos_ref):
        # ----- hoisted, loop-invariant constants (built once per grid step) --
        row_idx = lax.broadcasted_iota(jnp.int32, (H, Wp), 0)
        col_idx = lax.broadcasted_iota(jnp.int32, (H, Wp), 1)
        m_row_first = (row_idx != 0).astype(f32)          # zero halo above row 0
        m_row_last = (row_idx != H - 1).astype(f32)       # zero halo below row H-1
        if padded:
            # The zero pad columns already supply the j-1 / j+1 zero halo at
            # the real image border; only the garbage gradients in columns
            # >= W have to be masked out of the reductions.
            m_valid = (col_idx < W).astype(f32)
        else:
            m_col_prev = (col_idx != 0).astype(f32)        # zero halo left of col 0
            m_col_next = (col_idx != Wp - 1).astype(f32)   # zero halo right of col W-1
        # Static (C, H) band selector: P[c, i] = 1 iff row i belongs to chunk c.
        band = lax.broadcasted_iota(jnp.int32, (C, H), 0)
        ridx = lax.broadcasted_iota(jnp.int32, (C, H), 1)
        P = jnp.logical_and(ridx >= band * R, ridx < (band + 1) * R).astype(f32)

        def sobel(img):
            """Separable Sobel (cross-correlation, zero padding) -> (gy, gx)."""
            above = pltpu.roll(img, 1, axis=0) * m_row_first      # img[i-1]
            below = pltpu.roll(img, H - 1, axis=0) * m_row_last   # img[i+1]
            v_smooth = above + 2.0 * img + below                  # [1,2,1] vertical
            v_diff = above - below                                # [1,0,-1] vertical
            s_prev = pltpu.roll(v_smooth, 1, axis=1)              # col j-1
            s_next = pltpu.roll(v_smooth, Wp - 1, axis=1)         # col j+1
            d_prev = pltpu.roll(v_diff, 1, axis=1)
            d_next = pltpu.roll(v_diff, Wp - 1, axis=1)
            if padded:
                gx = (s_prev - s_next) * m_valid                  # [1,0,-1] horiz
                gy = (d_prev + 2.0 * v_diff + d_next) * m_valid   # [1,2,1]  horiz
            else:
                gx = s_prev * m_col_prev - s_next * m_col_next
                gy = d_prev * m_col_prev + 2.0 * v_diff + d_next * m_col_next
            return gy, gx

        def image_stats(ref, b):
            # Channel reduction in the native dtype (single cast to f32 after).
            # torch.mean's 1/C is dropped: the cosine term is invariant to a
            # common scale on pred & gt gradients.
            acc = ref[b, 0]
            for c in range(1, C):
                acc = acc + ref[b, c]
            gy, gx = sobel(acc.astype(f32))
            rs_y = jnp.sum(gy, axis=1, keepdims=True)             # (H, 1)
            rs_x = jnp.sum(gx, axis=1, keepdims=True)
            rq_y = jnp.sum(gy * gy, axis=1, keepdims=True)
            rq_x = jnp.sum(gx * gx, axis=1, keepdims=True)
            stacked = jnp.concatenate([rs_y, rs_x, rq_y, rq_x], axis=1)   # (H, 4)
            # One tiny MXU matmul replaces 4C lane-sparse slice+sum pairs.
            return jnp.dot(P, stacked, preferred_element_type=f32)       # (C, 4)

        def process_one(b):
            sp = image_stats(x_ref, b)                            # pred  (C, 4)
            st = image_stats(t_ref, b)                            # gt    (C, 4)
            # einsum('bijd,bikm->bijm') quirk of the module:
            #   prod[b, i] = sum(grad_pred[b, i, :]) * sum(grad_gt[b, i, :]).
            num = sp[:, 0:2] * st[:, 0:2]                         # (C, 2): [gy, gx]
            # Matches the reference exactly: no eps, all-zero bands give NaN.
            den = jnp.sqrt(sp[:, 2:4]) * jnp.sqrt(st[:, 2:4])
            cos_ref[b] = num / den                                # (C, 2)

        if unroll:
            # Tiny per-image working set: static unroll gives the LLO
            # scheduler full visibility without risking vreg spills.
            for b in range(NB):
                process_one(b)
        else:
            # Bounds the live f32 temporaries to a single image.
            @pl.loop(0, NB)
            def _(b):
                process_one(b)

    return kernel


def _tpu_vmem_capacity_bytes():
    try:
        return int(pltpu.get_tpu_info().vmem_capacity_bytes)
    except Exception:
        return 64 * 1024 * 1024          # conservative: v7x per-TensorCore size


def _pick_batch_block(N, C, H, Wp, itemsize):
    """Pick NB (images per grid step), the unroll flag and the VMEM limit."""
    vmem_cap = _tpu_vmem_capacity_bytes()
    # Headroom under the physical per-core capacity for Mosaic's own scratch:
    # ~51 MiB on v7x (64 MiB physical), ~102 MiB on v5e/v6e (128 MiB).
    vmem_limit = max(32 << 20, min(int(vmem_cap * 0.8), vmem_cap - (8 << 20)))

    per_image_slab = C * H * Wp * itemsize     # one native-dtype input image
    per_image_tmp = 10 * H * Wp * 4            # in-kernel f32 Sobel temporaries
    mask_bytes = 4 * H * Wp * 4                # hoisted f32 masks (per grid step)
    # Keep the grid at >= 2 steps so dual-TensorCore chips (v7x) shard the
    # batch axis across both cores; costs at most one ~0.35us step elsewhere.
    # TODO(synk): use the real TensorCore count once pltpu.get_tpu_info()
    # exposes it; ">= 2 grid steps" is a safe proxy.
    nb_cap = max(1, N // 2)
    nb = 1
    for cand in range(1, nb_cap + 1):
        if N % cand:
            continue
        unroll = (cand * H * Wp) <= (64 * 1024)
        live_tmp = per_image_tmp * (cand if unroll else 1)
        # 2 inputs x 2 pipeline buffers of NB images + live f32 temporaries.
        need = 4 * cand * per_image_slab + live_tmp + mask_bytes + (1 << 20)
        if need <= vmem_limit:
            nb = cand
    unroll = (nb * H * Wp) <= (64 * 1024)
    return nb, unroll, vmem_limit


@jax.jit
def full_normal_loss(x, target):
    """Pallas implementation of FullNormalLoss.forward(input, target)."""
    N, C, H, W = x.shape
    assert target.shape == x.shape
    # TODO(synk): general chunking when H % C != 0 (the .view(N, C, -1) chunks
    # then cross row boundaries); the row-band reduction requires H % C == 0.
    assert H % C == 0

    # Lane-pad W to a multiple of 128: zero columns double as the right-border
    # Sobel zero padding and absorb the lane-roll wrap, so the kernel needs no
    # per-call border compares and no slice+concat fallback.
    # TODO(synk): feed the unpadded array through a lane-padded BlockSpec
    # instead of this wrapper-side jnp.pad (saves one HBM round trip).
    Wp = ((W + 127) // 128) * 128
    if Wp != W:
        pad = ((0, 0), (0, 0), (0, 0), (0, Wp - W))
        x = jnp.pad(x, pad)
        target = jnp.pad(target, pad)

    NB, unroll, vmem_limit = _pick_batch_block(N, C, H, Wp, x.dtype.itemsize)
    # TODO(synk): add a row-band grid axis (Sobel halo + chunk-sum accumulation
    # in VMEM scratch) for images too large to double-buffer a whole
    # (C, H, Wp) slab, e.g. HD frames on v7x's 64 MiB VMEM.

    kernel = _make_kernel(NB, C, H, W, Wp, unroll)
    cos = pl.pallas_call(
        kernel,
        out_shape=jax.ShapeDtypeStruct((N, C, 2), jnp.float32),
        grid_spec=pltpu.PrefetchScalarGridSpec(
            num_scalar_prefetch=0,
            grid=(N // NB,),
            in_specs=[
                pl.BlockSpec((NB, C, H, Wp), lambda b: (b, 0, 0, 0)),
                pl.BlockSpec((NB, C, H, Wp), lambda b: (b, 0, 0, 0)),
            ],
            out_specs=pl.BlockSpec((NB, C, 2), lambda b: (b, 0, 0)),
        ),
        compiler_params=pltpu.CompilerParams(
            dimension_semantics=("parallel",),   # batch blocks are independent
            vmem_limit_bytes=vmem_limit,
        ),
    )(x, target)     # native dtype in; one f32 cast per image inside the kernel

    # Per-image ordering of the 2C cosine terms differs from the reference
    # (chunk-major vs direction-major) but the mean is order-invariant.
    return 1.0 - jnp.mean(cos)


def _reference_loss(x, t):
    """Pure-JAX transcription of the PyTorch module (verification only)."""
    def imgrad_yx(img):
        N, C, H, W = img.shape
        m = jnp.mean(img.astype(jnp.float32), axis=1)          # (N, H, W)
        fx = jnp.array([[1, 0, -1], [2, 0, -2], [1, 0, -1]], jnp.float32)
        fy = jnp.array([[1, 2, 1], [0, 0, 0], [-1, -2, -1]], jnp.float32)
        p = jnp.pad(m, ((0, 0), (1, 1), (1, 1)))

        def conv(w):
            out = jnp.zeros_like(m)
            for u in range(3):
                for v in range(3):
                    out = out + w[u, v] * p[:, u:u + H, v:v + W]
            return out

        gx = conv(fx)
        gy = conv(fy)
        return jnp.concatenate([gy.reshape(N, C, -1), gx.reshape(N, C, -1)],
                               axis=1)

    gp = imgrad_yx(x)
    gt = imgrad_yx(t)
    prod = jnp.einsum('bijd,bikm->bijm',
                      gp[:, :, None, :], gt[:, :, :, None])[..., 0, 0]
    pn = jnp.sqrt(jnp.sum(gp ** 2, axis=-1))
    gn = jnp.sqrt(jnp.sum(gt ** 2, axis=-1))
    return 1.0 - jnp.mean(prod / (pn * gn))


if __name__ == "__main__":
    key = jax.random.PRNGKey(0)
    # (a) lane-aligned width (no padding, col-mask path);
    # (b) W % 128 != 0 (wrapper lane-pad + validity-mask path).
    for (N, C, H, W) in [(2, 4, 16, 128), (2, 4, 16, 96)]:
        key, k1, k2 = jax.random.split(key, 3)
        x = jax.random.normal(k1, (N, C, H, W), jnp.float32)
        t = jax.random.normal(k2, (N, C, H, W), jnp.float32)

        loss = jax.block_until_ready(full_normal_loss(x, t))
        ref = jax.block_until_ready(_reference_loss(x, t))

        assert jnp.isfinite(loss), (N, C, H, W, loss)
        assert jnp.allclose(loss, ref, atol=1e-4, rtol=1e-4), \
            (N, C, H, W, loss, ref)
    print("KERNEL_OK")
</pallas_src>

<mosaic_0001>
module attributes {stable_mosaic.version = 11 : i64} {
  func.func @kernel(%arg0: i32, %arg1: memref<1x4x16x128xf32, #tpu.memory_space<vmem>>, %arg2: memref<1x4x16x128xf32, #tpu.memory_space<vmem>>, %arg3: memref<1x4x2xf32, #tpu.memory_space<vmem>>) attributes {dimension_semantics = [#tpu.dimension_semantics<parallel>], iteration_bounds = array<i64: 2>, scalar_prefetch = 0 : i64, scratch_operands = 0 : i64, tpu.core_type = #tpu.core_type<tc>, window_params = [{transform_indices = @transform_0, window_bounds = array<i64: 1, 4, 16, 128>}, {transform_indices = @transform_1, window_bounds = array<i64: 1, 4, 16, 128>}, {transform_indices = @transform_2, window_bounds = array<i64: 1, 4, 2>}]} {
    %0 = tpu.iota {dimensions = array<i32: 0>} : vector<16x128xi32>
    %1 = tpu.iota {dimensions = array<i32: 1>} : vector<16x128xi32>
    %c0_i32 = arith.constant 0 : i32
    %2 = vector.broadcast %c0_i32 : i32 to vector<16x128xi32>
    %3 = arith.cmpi ne, %0, %2 : vector<16x128xi32>
    %4 = arith.extui %3 : vector<16x128xi1> to vector<16x128xi32>
    %5 = arith.sitofp %4 : vector<16x128xi32> to vector<16x128xf32>
    %c15_i32 = arith.constant 15 : i32
    %6 = vector.broadcast %c15_i32 : i32 to vector<16x128xi32>
    %7 = arith.cmpi ne, %0, %6 : vector<16x128xi32>
    %8 = arith.extui %7 : vector<16x128xi1> to vector<16x128xi32>
    %9 = arith.sitofp %8 : vector<16x128xi32> to vector<16x128xf32>
    %c0_i32_0 = arith.constant 0 : i32
    %10 = vector.broadcast %c0_i32_0 : i32 to vector<16x128xi32>
    %11 = arith.cmpi ne, %1, %10 : vector<16x128xi32>
    %12 = arith.extui %11 : vector<16x128xi1> to vector<16x128xi32>
    %13 = arith.sitofp %12 : vector<16x128xi32> to vector<16x128xf32>
    %c127_i32 = arith.constant 127 : i32
    %14 = vector.broadcast %c127_i32 : i32 to vector<16x128xi32>
    %15 = arith.cmpi ne, %1, %14 : vector<16x128xi32>
    %16 = arith.extui %15 : vector<16x128xi1> to vector<16x128xi32>
    %17 = arith.sitofp %16 : vector<16x128xi32> to vector<16x128xf32>
    %18 = tpu.iota {dimensions = array<i32: 0>} : vector<4x16xi32>
    %19 = tpu.iota {dimensions = array<i32: 1>} : vector<4x16xi32>
    %c4_i32 = arith.constant 4 : i32
    %20 = vector.broadcast %c4_i32 : i32 to vector<4x16xi32>
    %21 = arith.muli %18, %20 : vector<4x16xi32>
    %22 = arith.cmpi sge, %19, %21 : vector<4x16xi32>
    %c1_i32 = arith.constant 1 : i32
    %23 = vector.broadcast %c1_i32 : i32 to vector<4x16xi32>
    %24 = arith.addi %18, %23 : vector<4x16xi32>
    %c4_i32_1 = arith.constant 4 : i32
    %25 = vector.broadcast %c4_i32_1 : i32 to vector<4x16xi32>
    %26 = arith.muli %24, %25 : vector<4x16xi32>
    %27 = arith.cmpi slt, %19, %26 : vector<4x16xi32>
    %28 = arith.andi %22, %27 : vector<4x16xi1>
    %29 = arith.extui %28 : vector<4x16xi1> to vector<4x16xi32>
    %30 = arith.sitofp %29 : vector<4x16xi32> to vector<4x16xf32>
    %c0 = arith.constant 0 : index
    %c0_2 = arith.constant 0 : index
    %c0_3 = arith.constant 0 : index
    %c0_4 = arith.constant 0 : index
    %31 = vector.load %arg1[%c0, %c0_2, %c0_3, %c0_4] : memref<1x4x16x128xf32, #tpu.memory_space<vmem>>, vector<1x1x16x128xf32>
    %32 = vector.shape_cast %31 : vector<1x1x16x128xf32> to vector<16x128xf32>
    %c0_5 = arith.constant 0 : index
    %c1 = arith.constant 1 : index
    %c0_6 = arith.constant 0 : index
    %c0_7 = arith.constant 0 : index
    %33 = vector.load %arg1[%c0_5, %c1, %c0_6, %c0_7] : memref<1x4x16x128xf32, #tpu.memory_space<vmem>>, vector<1x1x16x128xf32>
    %34 = vector.shape_cast %33 : vector<1x1x16x128xf32> to vector<16x128xf32>
    %35 = arith.addf %32, %34 : vector<16x128xf32>
    %c0_8 = arith.constant 0 : index
    %c2 = arith.constant 2 : index
    %c0_9 = arith.constant 0 : index
    %c0_10 = arith.constant 0 : index
    %36 = vector.load %arg1[%c0_8, %c2, %c0_9, %c0_10] : memref<1x4x16x128xf32, #tpu.memory_space<vmem>>, vector<1x1x16x128xf32>
    %37 = vector.shape_cast %36 : vector<1x1x16x128xf32> to vector<16x128xf32>
    %38 = arith.addf %35, %37 : vector<16x128xf32>
    %c0_11 = arith.constant 0 : index
    %c3 = arith.constant 3 : index
    %c0_12 = arith.constant 0 : index
    %c0_13 = arith.constant 0 : index
    %39 = vector.load %arg1[%c0_11, %c3, %c0_12, %c0_13] : memref<1x4x16x128xf32, #tpu.memory_space<vmem>>, vector<1x1x16x128xf32>
    %40 = vector.shape_cast %39 : vector<1x1x16x128xf32> to vector<16x128xf32>
    %41 = arith.addf %38, %40 : vector<16x128xf32>
    %c1_i32_14 = arith.constant 1 : i32
    %42 = tpu.dynamic_rotate %41 by %c1_i32_14 dim 0 : vector<16x128xf32>, i32 -> vector<16x128xf32>
    %43 = arith.mulf %42, %5 : vector<16x128xf32>
    %c15_i32_15 = arith.constant 15 : i32
    %44 = tpu.dynamic_rotate %41 by %c15_i32_15 dim 0 : vector<16x128xf32>, i32 -> vector<16x128xf32>
    %45 = arith.mulf %44, %9 : vector<16x128xf32>
    %cst = arith.constant 2.000000e+00 : f32
    %46 = vector.broadcast %cst : f32 to vector<16x128xf32>
    %47 = arith.mulf %46, %41 : vector<16x128xf32>
    %48 = arith.addf %43, %47 : vector<16x128xf32>
    %49 = arith.addf %48, %45 : vector<16x128xf32>
    %50 = arith.subf %43, %45 : vector<16x128xf32>
    %c1_i32_16 = arith.constant 1 : i32
    %51 = tpu.dynamic_rotate %49 by %c1_i32_16 dim 1 : vector<16x128xf32>, i32 -> vector<16x128xf32>
    %c127_i32_17 = arith.constant 127 : i32
    %52 = tpu.dynamic_rotate %49 by %c127_i32_17 dim 1 : vector<16x128xf32>, i32 -> vector<16x128xf32>
    %c1_i32_18 = arith.constant 1 : i32
    %53 = tpu.dynamic_rotate %50 by %c1_i32_18 dim 1 : vector<16x128xf32>, i32 -> vector<16x128xf32>
    %c127_i32_19 = arith.constant 127 : i32
    %54 = tpu.dynamic_rotate %50 by %c127_i32_19 dim 1 : vector<16x128xf32>, i32 -> vector<16x128xf32>
    %55 = arith.mulf %51, %13 : vector<16x128xf32>
    %56 = arith.mulf %52, %17 : vector<16x128xf32>
    %57 = arith.subf %55, %56 : vector<16x128xf32>
    %58 = arith.mulf %53, %13 : vector<16x128xf32>
    %cst_20 = arith.constant 2.000000e+00 : f32
    %59 = vector.broadcast %cst_20 : f32 to vector<16x128xf32>
    %60 = arith.mulf %59, %50 : vector<16x128xf32>
    %61 = arith.addf %58, %60 : vector<16x128xf32>
    %62 = arith.mulf %54, %17 : vector<16x128xf32>
    %63 = arith.addf %61, %62 : vector<16x128xf32>
    %cst_21 = arith.constant dense<0.000000e+00> : vector<16xf32>
    %64 = vector.multi_reduction <add>, %63, %cst_21 [1] : vector<16x128xf32> to vector<16xf32>
    %65 = vector.shape_cast %64 : vector<16xf32> to vector<16x1xf32>
    %cst_22 = arith.constant dense<0.000000e+00> : vector<16xf32>
    %66 = vector.multi_reduction <add>, %57, %cst_22 [1] : vector<16x128xf32> to vector<16xf32>
    %67 = vector.shape_cast %66 : vector<16xf32> to vector<16x1xf32>
    %68 = arith.mulf %63, %63 : vector<16x128xf32>
    %cst_23 = arith.constant dense<0.000000e+00> : vector<16xf32>
    %69 = vector.multi_reduction <add>, %68, %cst_23 [1] : vector<16x128xf32> to vector<16xf32>
    %70 = vector.shape_cast %69 : vector<16xf32> to vector<16x1xf32>
    %71 = arith.mulf %57, %57 : vector<16x128xf32>
    %cst_24 = arith.constant dense<0.000000e+00> : vector<16xf32>
    %72 = vector.multi_reduction <add>, %71, %cst_24 [1] : vector<16x128xf32> to vector<16xf32>
    %73 = vector.shape_cast %72 : vector<16xf32> to vector<16x1xf32>
    %74 = tpu.concatenate %65, %67, %70, %73 in 1 : vector<16x1xf32>, vector<16x1xf32>, vector<16x1xf32>, vector<16x1xf32> -> vector<16x4xf32>
    %cst_25 = arith.constant dense<0.000000e+00> : vector<4x4xf32>
    %75 = tpu.matmul %30, %74, %cst_25 {dimension_numbers = #tpu.dot_dimension_numbers<[1], [0], [0], [1], [0, 0, 1, 1], [], []>} : vector<4x16xf32>, vector<16x4xf32>, vector<4x4xf32> -> vector<4x4xf32>
    %c0_26 = arith.constant 0 : index
    %c0_27 = arith.constant 0 : index
    %c0_28 = arith.constant 0 : index
    %c0_29 = arith.constant 0 : index
    %76 = vector.load %arg2[%c0_26, %c0_27, %c0_28, %c0_29] : memref<1x4x16x128xf32, #tpu.memory_space<vmem>>, vector<1x1x16x128xf32>
    %77 = vector.shape_cast %76 : vector<1x1x16x128xf32> to vector<16x128xf32>
    %c0_30 = arith.constant 0 : index
    %c1_31 = arith.constant 1 : index
    %c0_32 = arith.constant 0 : index
    %c0_33 = arith.constant 0 : index
    %78 = vector.load %arg2[%c0_30, %c1_31, %c0_32, %c0_33] : memref<1x4x16x128xf32, #tpu.memory_space<vmem>>, vector<1x1x16x128xf32>
    %79 = vector.shape_cast %78 : vector<1x1x16x128xf32> to vector<16x128xf32>
    %80 = arith.addf %77, %79 : vector<16x128xf32>
    %c0_34 = arith.constant 0 : index
    %c2_35 = arith.constant 2 : index
    %c0_36 = arith.constant 0 : index
    %c0_37 = arith.constant 0 : index
    %81 = vector.load %arg2[%c0_34, %c2_35, %c0_36, %c0_37] : memref<1x4x16x128xf32, #tpu.memory_space<vmem>>, vector<1x1x16x128xf32>
    %82 = vector.shape_cast %81 : vector<1x1x16x128xf32> to vector<16x128xf32>
    %83 = arith.addf %80, %82 : vector<16x128xf32>
    %c0_38 = arith.constant 0 : index
    %c3_39 = arith.constant 3 : index
    %c0_40 = arith.constant 0 : index
    %c0_41 = arith.constant 0 : index
    %84 = vector.load %arg2[%c0_38, %c3_39, %c0_40, %c0_41] : memref<1x4x16x128xf32, #tpu.memory_space<vmem>>, vector<1x1x16x128xf32>
    %85 = vector.shape_cast %84 : vector<1x1x16x128xf32> to vector<16x128xf32>
    %86 = arith.addf %83, %85 : vector<16x128xf32>
    %c1_i32_42 = arith.constant 1 : i32
    %87 = tpu.dynamic_rotate %86 by %c1_i32_42 dim 0 : vector<16x128xf32>, i32 -> vector<16x128xf32>
    %88 = arith.mulf %87, %5 : vector<16x128xf32>
    %c15_i32_43 = arith.constant 15 : i32
    %89 = tpu.dynamic_rotate %86 by %c15_i32_43 dim 0 : vector<16x128xf32>, i32 -> vector<16x128xf32>
    %90 = arith.mulf %89, %9 : vector<16x128xf32>
    %cst_44 = arith.constant 2.000000e+00 : f32
    %91 = vector.broadcast %cst_44 : f32 to vector<16x128xf32>
    %92 = arith.mulf %91, %86 : vector<16x128xf32>
    %93 = arith.addf %88, %92 : vector<16x128xf32>
    %94 = arith.addf %93, %90 : vector<16x128xf32>
    %95 = arith.subf %88, %90 : vector<16x128xf32>
    %c1_i32_45 = arith.constant 1 : i32
    %96 = tpu.dynamic_rotate %94 by %c1_i32_45 dim 1 : vector<16x128xf32>, i32 -> vector<16x128xf32>
    %c127_i32_46 = arith.constant 127 : i32
    %97 = tpu.dynamic_rotate %94 by %c127_i32_46 dim 1 : vector<16x128xf32>, i32 -> vector<16x128xf32>
    %c1_i32_47 = arith.constant 1 : i32
    %98 = tpu.dynamic_rotate %95 by %c1_i32_47 dim 1 : vector<16x128xf32>, i32 -> vector<16x128xf32>
    %c127_i32_48 = arith.constant 127 : i32
    %99 = tpu.dynamic_rotate %95 by %c127_i32_48 dim 1 : vector<16x128xf32>, i32 -> vector<16x128xf32>
    %100 = arith.mulf %96, %13 : vector<16x128xf32>
    %101 = arith.mulf %97, %17 : vector<16x128xf32>
    %102 = arith.subf %100, %101 : vector<16x128xf32>
    %103 = arith.mulf %98, %13 : vector<16x128xf32>
    %cst_49 = arith.constant 2.000000e+00 : f32
    %104 = vector.broadcast %cst_49 : f32 to vector<16x128xf32>
    %105 = arith.mulf %104, %95 : vector<16x128xf32>
    %106 = arith.addf %103, %105 : vector<16x128xf32>
    %107 = arith.mulf %99, %17 : vector<16x128xf32>
    %108 = arith.addf %106, %107 : vector<16x128xf32>
    %cst_50 = arith.constant dense<0.000000e+00> : vector<16xf32>
    %109 = vector.multi_reduction <add>, %108, %cst_50 [1] : vector<16x128xf32> to vector<16xf32>
    %110 = vector.shape_cast %109 : vector<16xf32> to vector<16x1xf32>
    %cst_51 = arith.constant dense<0.000000e+00> : vector<16xf32>
    %111 = vector.multi_reduction <add>, %102, %cst_51 [1] : vector<16x128xf32> to vector<16xf32>
    %112 = vector.shape_cast %111 : vector<16xf32> to vector<16x1xf32>
    %113 = arith.mulf %108, %108 : vector<16x128xf32>
    %cst_52 = arith.constant dense<0.000000e+00> : vector<16xf32>
    %114 = vector.multi_reduction <add>, %113, %cst_52 [1] : vector<16x128xf32> to vector<16xf32>
    %115 = vector.shape_cast %114 : vector<16xf32> to vector<16x1xf32>
    %116 = arith.mulf %102, %102 : vector<16x128xf32>
    %cst_53 = arith.constant dense<0.000000e+00> : vector<16xf32>
    %117 = vector.multi_reduction <add>, %116, %cst_53 [1] : vector<16x128xf32> to vector<16xf32>
    %118 = vector.shape_cast %117 : vector<16xf32> to vector<16x1xf32>
    %119 = tpu.concatenate %110, %112, %115, %118 in 1 : vector<16x1xf32>, vector<16x1xf32>, vector<16x1xf32>, vector<16x1xf32> -> vector<16x4xf32>
    %cst_54 = arith.constant dense<0.000000e+00> : vector<4x4xf32>
    %120 = tpu.matmul %30, %119, %cst_54 {dimension_numbers = #tpu.dot_dimension_numbers<[1], [0], [0], [1], [0, 0, 1, 1], [], []>} : vector<4x16xf32>, vector<16x4xf32>, vector<4x4xf32> -> vector<4x4xf32>
    %121 = vector.extract_strided_slice %75 {offsets = [0, 0], sizes = [4, 2], strides = [1, 1]} : vector<4x4xf32> to vector<4x2xf32>
    %122 = vector.extract_strided_slice %120 {offsets = [0, 0], sizes = [4, 2], strides = [1, 1]} : vector<4x4xf32> to vector<4x2xf32>
    %123 = arith.mulf %121, %122 : vector<4x2xf32>
    %124 = vector.extract_strided_slice %75 {offsets = [0, 2], sizes = [4, 2], strides = [1, 1]} : vector<4x4xf32> to vector<4x2xf32>
    %125 = math.sqrt %124 : vector<4x2xf32>
    %126 = vector.extract_strided_slice %120 {offsets = [0, 2], sizes = [4, 2], strides = [1, 1]} : vector<4x4xf32> to vector<4x2xf32>
    %127 = math.sqrt %126 : vector<4x2xf32>
    %128 = arith.mulf %125, %127 : vector<4x2xf32>
    %129 = arith.divf %123, %128 : vector<4x2xf32>
    %c0_55 = arith.constant 0 : index
    %c0_56 = arith.constant 0 : index
    %c0_57 = arith.constant 0 : index
    %130 = vector.load %arg3[%c0_55, %c0_56, %c0_57] : memref<1x4x2xf32, #tpu.memory_space<vmem>>, vector<1x4x2xf32>
    %131 = vector.shape_cast %130 : vector<1x4x2xf32> to vector<4x2xf32>
    %132 = vector.shape_cast %129 : vector<4x2xf32> to vector<1x4x2xf32>
    tpu.vector_store %arg3[%c0_55, %c0_56, %c0_57], %132 {strides = array<i32>} : memref<1x4x2xf32, #tpu.memory_space<vmem>>, vector<1x4x2xf32>,
    return
  }
  func.func @transform_0(%arg0: i32) -> (i32, i32, i32, i32) {
    %c0_i32 = arith.constant 0 : i32
    %c0_i32_0 = arith.constant 0 : i32
    %c0_i32_1 = arith.constant 0 : i32
    %c0_i32_2 = arith.constant 0 : i32
    return %arg0, %c0_i32, %c0_i32_0, %c0_i32_1 : i32, i32, i32, i32
  }
  func.func @transform_1(%arg0: i32) -> (i32, i32, i32, i32) {
    %c0_i32 = arith.constant 0 : i32
    %c0_i32_0 = arith.constant 0 : i32
    %c0_i32_1 = arith.constant 0 : i32
    %c0_i32_2 = arith.constant 0 : i32
    return %arg0, %c0_i32, %c0_i32_0, %c0_i32_1 : i32, i32, i32, i32
  }
  func.func @transform_2(%arg0: i32) -> (i32, i32, i32) {
    %c0_i32 = arith.constant 0 : i32
    %c0_i32_0 = arith.constant 0 : i32
    %c0_i32_1 = arith.constant 0 : i32
    return %arg0, %c0_i32, %c0_i32_0 : i32, i32, i32
  }
}

</mosaic_0001>

<llo_original>
// kernel: full_normal_loss.1
$region0: #{full_normal_loss.1}
  #allocation0 [shape = 'u32[]', space=smem, size = 0x4, offset = 0x4, fixed_abs, tag = 'smem constant byte address 0x4 - core index']
  #allocation1 [shape = 'u32[144,128]{1,0:T(1,128)}', space=vmem, size = 0x12000, scoped, tag = 'internal scratch']
  %s0 = inlined_call_operand.hbm [shape: f32[2,4,16,128], index: 0, kind: input, shape index: {}]
  %s1 = inlined_call_operand.hbm [shape: f32[2,4,16,128], index: 1, kind: input, shape index: {}]
  %s2 = inlined_call_operand.vmem [shape: f32[2,4,2], index: 2, kind: output, shape index: {}]
  %s3 = sld [smem:[#allocation0]]
  $region49: #{full_normal_loss.1} parent=0
    _
  %s5 = ssub.s32 1, %s3
  %s6 = scalar_select 0, %s5, %s3
  $region1: #{full_normal_loss.1} parent=0
    #allocation2 [shape = 'u8[65536]{0}', space=vmem, size = 0x10000, scoped, tag = 'input window, operand 0']
    #allocation3 [shape = 's32[2]{0}', space=sflag, size = 0x8, scoped, tag = 'scoped memory for full_normal_loss.1']
    #allocation4 [shape = 'u8[65536]{0}', space=vmem, size = 0x10000, scoped, tag = 'input window, operand 1']
    #allocation5 [shape = 's32[2]{0}', space=sflag, size = 0x8, scoped, tag = 'scoped memory for full_normal_loss.1']
    %7 = vsyncpa [#allocation3], 0
    %s8 = scalar_lea.sflag [#allocation3], 1
    %9 = vsyncpa %s8, 0
    %10 = vsyncpa [#allocation5], 0
    %s11 = scalar_lea.sflag [#allocation5], 1
    %12 = vsyncpa %s11, 0
    loop: start=0, step=1, limit=4
    $region2: #{full_normal_loss.1} parent=1 // loop_pre_header
      _
    $region3: #{full_normal_loss.1} parent=1 // loop_header
      %s14 = sphi 0, %s18
      %p15 = scmp.ge.s32.totalorder %s14, 4
      %s24 = sphi 0, %s26
      %s27 = sphi 0, %s24
      %s28 = sphi 0, %s27
      %s44 = sphi 0, %s28
      %s50 = sphi 0, %s52
      %s53 = sphi 0, %s50
      %s54 = sphi 0, %s53
      %s70 = sphi 0, %s54
      %s76 = sphi 0, %s78
      %s79 = sphi 0, %s76
      %s80 = sphi 0, %s79
      %s96 = sphi 0, %s80
    $region4: #{full_normal_loss.1} parent=1 // loop_header_branch
      %17 = sbr.rel (%p15) target = $region8
    $region5: #{full_normal_loss.1} parent=1 // loop_body
      %s19 = ssub.s32 %s14, 1
      %s20 = ssub.s32 %s14, 2
      %s21 = sadd.s32 %s14, 1
      %s22 = ssub.s32 %s14, %s21
      %p23 = scmp.eq.s32.totalorder %s22, 0
      %s25 = sadd.s32 %s24, 1
      %s26 = scalar_select %p23, %s24, %s25
      %p29 = pneg %p23
      %p30 = scmp.eq.s32.totalorder %s14, 1
      %p31 = por %p29, %p30
      %p32 = scmp.ne.s32.totalorder %s24, %s27
      %p33 = scmp.eq.s32.totalorder %s14, 0
      %p34 = por %p32, %p33
      %p35 = scmp.ne.s32.totalorder %s24, %s27
      %p36 = scmp.eq.s32.totalorder %s19, 1
      %p37 = por %p35, %p36
      %p38 = scmp.ne.s32.totalorder %s27, %s28
      %p39 = scmp.eq.s32.totalorder %s19, 0
      %p40 = por %p38, %p39
      %p41 = scmp.ne.s32.totalorder %s27, %s28
      %p42 = scmp.eq.s32.totalorder %s20, 1
      %p43 = por %p41, %p42
      %p45 = scmp.ne.s32.totalorder %s28, %s44
      %p46 = scmp.eq.s32.totalorder %s20, 0
      %p47 = por %p45, %p46
      %s48 = ssub.s32 %s14, %s21
      %p49 = scmp.eq.s32.totalorder %s48, 0
      %s51 = sadd.s32 %s50, 1
      %s52 = scalar_select %p49, %s50, %s51
      %p55 = pneg %p49
      %p56 = scmp.eq.s32.totalorder %s14, 1
      %p57 = por %p55, %p56
      %p58 = scmp.ne.s32.totalorder %s50, %s53
      %p59 = scmp.eq.s32.totalorder %s14, 0
      %p60 = por %p58, %p59
      %p61 = scmp.ne.s32.totalorder %s50, %s53
      %p62 = scmp.eq.s32.totalorder %s19, 1
      %p63 = por %p61, %p62
      %p64 = scmp.ne.s32.totalorder %s53, %s54
      %p65 = scmp.eq.s32.totalorder %s19, 0
      %p66 = por %p64, %p65
      %p67 = scmp.ne.s32.totalorder %s53, %s54
      %p68 = scmp.eq.s32.totalorder %s20, 1
      %p69 = por %p67, %p68
      %p71 = scmp.ne.s32.totalorder %s54, %s70
      %p72 = scmp.eq.s32.totalorder %s20, 0
      %p73 = por %p71, %p72
      %s74 = ssub.s32 %s14, %s21
      %p75 = scmp.eq.s32.totalorder %s74, 0
      %s77 = sadd.s32 %s76, 1
      %s78 = scalar_select %p75, %s76, %s77
      %p81 = pneg %p75
      %p82 = scmp.eq.s32.totalorder %s14, 1
      %p83 = por %p81, %p82
      %p84 = scmp.ne.s32.totalorder %s76, %s79
      %p85 = scmp.eq.s32.totalorder %s14, 0
      %p86 = por %p84, %p85
      %p87 = scmp.ne.s32.totalorder %s76, %s79
      %p88 = scmp.eq.s32.totalorder %s19, 1
      %p89 = por %p87, %p88
      %p90 = scmp.ne.s32.totalorder %s79, %s80
      %p91 = scmp.eq.s32.totalorder %s19, 0
      %p92 = por %p90, %p91
      %p93 = scmp.ne.s32.totalorder %s79, %s80
      %p94 = scmp.eq.s32.totalorder %s20, 1
      %p95 = por %p93, %p94
      %p97 = scmp.ne.s32.totalorder %s80, %s96
      %p98 = scmp.eq.s32.totalorder %s20, 0
      %p99 = por %p97, %p98
      %p100 = scmp.le.s32.totalorder 1, %s14
      %p101 = scmp.lt.s32.totalorder %s14, 3
      %p102 = pnand %p100, %p101
      %p103 = pneg %p102
      // Predicated region
      $region9: #{full_normal_loss.1} parent=5 // pred_check
        _
      $region10: #{full_normal_loss.1} parent=5 // pred_check_branch
        %105 = sbr.rel (%p102) target = $region12
      $region11: #{full_normal_loss.1} parent=5 // pred_region
        %s106 = ssub.s32 %s14, 1
      $region12: #{full_normal_loss.1} parent=5 // pred_fallthru
        _
      %p107 = scmp.lt.s32.totalorder %s14, 2
      // Predicated region
      $region13: #{full_normal_loss.1} parent=5 // pred_check
        %p108 = pneg %p107
      $region14: #{full_normal_loss.1} parent=5 // pred_check_branch
        %110 = sbr.rel (%p108) target = $region16
      $region15: #{full_normal_loss.1} parent=5 // pred_region
        // Predicated region
        $region17: #{full_normal_loss.1} parent=15 // pred_check
          %p111 = pneg %p34
        $region18: #{full_normal_loss.1} parent=15 // pred_check_branch
          %113 = sbr.rel (%p111) target = $region20
        $region19: #{full_normal_loss.1} parent=15 // pred_region
          %s114 = sand.u32 %s24, 1
          %s115 = scalar_lea.sflag [#allocation3], %s114
          %s116 = sand.u32 %s24, 1
          %s117 = smul.addr %s116, 64
          %s118 = scalar_lea.vmem [#allocation2], %s117
          %s120 = ssub.s32 1024, 1024
          %121 = vsyncadd %s115, %s120
          %s122 = smul.addr %s14, 8
          %s123 = smul.addr %s122, 128
          %s124 = scalar_lea.hbm %s0, %s123
          %s125 = sshll.u32 %s118, 4
          %s126 = int_to_ptr.vmem [resolvable:$true] %s125
          %131 = dma.hbm_to_vmem [thread:$0]  %s124, 1024, %s126, %s115, 128, 128, 8
        $region20: #{full_normal_loss.1} parent=15 // pred_fallthru
          _
        // Predicated region
        $region21: #{full_normal_loss.1} parent=15 // pred_check
          %p132 = pneg %p60
        $region22: #{full_normal_loss.1} parent=15 // pred_check_branch
          %134 = sbr.rel (%p132) target = $region24
        $region23: #{full_normal_loss.1} parent=15 // pred_region
          %s135 = sand.u32 %s50, 1
          %s136 = scalar_lea.sflag [#allocation5], %s135
          %s137 = sand.u32 %s50, 1
          %s138 = smul.addr %s137, 64
          %s139 = scalar_lea.vmem [#allocation4], %s138
          %s141 = ssub.s32 1024, 1024
          %142 = vsyncadd %s136, %s141
          %s143 = smul.addr %s14, 8
          %s144 = smul.addr %s143, 128
          %s145 = scalar_lea.hbm %s1, %s144
          %s146 = sshll.u32 %s139, 4
          %s147 = int_to_ptr.vmem [resolvable:$true] %s146
          %152 = dma.hbm_to_vmem [thread:$0]  %s145, 1024, %s147, %s136, 128, 128, 8
        $region24: #{full_normal_loss.1} parent=15 // pred_fallthru
          _
      $region16: #{full_normal_loss.1} parent=5 // pred_fallthru
        _
      %p153 = scmp.le.s32.totalorder 1, %s14
      %p154 = scmp.lt.s32.totalorder %s14, 3
      %p155 = pnand %p153, %p154
      %p156 = pneg %p155
      // Predicated region
      $region25: #{full_normal_loss.1} parent=5 // pred_check
        _
      $region26: #{full_normal_loss.1} parent=5 // pred_check_branch
        %158 = sbr.rel (%p155) target = $region28
      $region27: #{full_normal_loss.1} parent=5 // pred_region
        %s159 = ssub.s32 %s14, 1
        %s160 = sand.u32 %s27, 1
        %s161 = scalar_lea.sflag [#allocation3], %s160
        %s162 = sand.u32 %s27, 1
        %s163 = smul.addr %s162, 64
        %s164 = scalar_lea.vmem [#allocation2], %s163
        // Predicated region
        $region29: #{full_normal_loss.1} parent=27 // pred_check
          %p165 = pneg %p40
        $region30: #{full_normal_loss.1} parent=27 // pred_check_branch
          %167 = sbr.rel (%p165) target = $region32
        $region31: #{full_normal_loss.1} parent=27 // pred_region
          %168 = dma.done %s161, 1024
        $region32: #{full_normal_loss.1} parent=27 // pred_fallthru
          _
        %s169 = sand.u32 %s53, 1
        %s170 = scalar_lea.sflag [#allocation5], %s169
        %s171 = sand.u32 %s53, 1
        %s172 = smul.addr %s171, 64
        %s173 = scalar_lea.vmem [#allocation4], %s172
        // Predicated region
        $region33: #{full_normal_loss.1} parent=27 // pred_check
          %p174 = pneg %p66
        $region34: #{full_normal_loss.1} parent=27 // pred_check_branch
          %176 = sbr.rel (%p174) target = $region36
        $region35: #{full_normal_loss.1} parent=27 // pred_region
          %177 = dma.done %s170, 1024
        $region36: #{full_normal_loss.1} parent=27 // pred_fallthru
          _
        %s178 = sand.u32 %s27, 1
        %s179 = scalar_lea.sflag [#allocation3], %s178
        %s180 = sand.u32 %s27, 1
        %s181 = smul.addr %s180, 64
        %s182 = scalar_lea.vmem [#allocation2], %s181
        %p183 = pneg %p40
        %p184 = pneg %p37
        %s185 = sand.u32 %s53, 1
        %s186 = scalar_lea.sflag [#allocation5], %s185
        %s187 = sand.u32 %s53, 1
        %s188 = smul.addr %s187, 64
        %s189 = scalar_lea.vmem [#allocation4], %s188
        %p190 = pneg %p66
        %p191 = pneg %p63
        %p192 = pneg %p92
        %p193 = pneg %p89
        %p194 = scmp.lt.s32.totalorder %s19, 1
        %s195 = scalar_select %p194, %s19, 1
        %s196 = smul.addr %s195, 4
        %s197 = scalar_lea.vmem %s2, %s196
        %p198 = scmp.lt.s32.totalorder %s19, 1
        %s199 = scalar_select %p198, %s19, 1
        %s200 = smul.addr %s199, 4
        %s201 = scalar_lea.vmem %s2, %s200
        %v202 = vlaneseq
        %v203 = vshrl.u32 %v202, 7
        %v204 = vadd.s32 %v203, 8
        %v205 = vlaneseq
        %v206 = vand.u32 %v205, 127
        %vm207 = vcmp.ne.s32.totalorder %v203, 0
        %vm208 = vcmp.ne.s32.totalorder %v204, 0
        %v209 = vsel %vm207, 1, 0
        %v210 = vsel %vm208, 1, 0
        %v211 = vcvt.s32.f32 %v209
        %v212 = vcvt.s32.f32 %v210
        %vm213 = vcmp.ne.s32.totalorder %v203, 15
        %vm214 = vcmp.ne.s32.totalorder %v204, 15
        %v215 = vsel %vm213, 1, 0
        %v216 = vsel %vm214, 1, 0
        %v217 = vcvt.s32.f32 %v215
        %v218 = vcvt.s32.f32 %v216
        %vm219 = vcmp.ne.s32.totalorder %v206, 0
        %v220 = vsel %vm219, 1, 0
        %v221 = vcvt.s32.f32 %v220
        %vm222 = vcmp.ne.s32.totalorder %v206, 127
        %v223 = vsel %vm222, 1, 0
        %v224 = vcvt.s32.f32 %v223
        %v225 = vmul.u32 %v203, 4
        %vm226 = vcmp.ge.s32.totalorder %v206, %v225
        %v227 = vadd.s32 %v203, 1
        %v228 = vmul.u32 %v227, 4
        %vm229 = vcmp.lt.s32.totalorder %v206, %v228
        %vm230 = vmand %vm226, %vm229
        %v231 = vsel %vm230, 1, 0
        %v232 = vcvt.s32.f32 %v231
        %v233 = vld [vmem:[%s164] sm:$0xff]
        %v234 = vld [vmem:[%s164 + $0x8] sm:$0xff]
        %s235 = scalar_lea.vmem %s164, 16 [#allocation2]
        %v236 = vld [vmem:[%s235] sm:$0xff]
        %v237 = vld [vmem:[%s235 + $0x8] sm:$0xff]
        %v238 = vadd.f32 %v233, %v236
        %v239 = vadd.f32 %v234, %v237
        %s240 = scalar_lea.vmem %s164, 32 [#allocation2]
        %v241 = vld [vmem:[%s240] sm:$0xff]
        %v242 = vld [vmem:[%s240 + $0x8] sm:$0xff]
        %v243 = vadd.f32 %v238, %v241
        %v244 = vadd.f32 %v239, %v242
        %s245 = scalar_lea.vmem %s164, 48 [#allocation2]
        %v246 = vld [vmem:[%s245] sm:$0xff]
        %v247 = vld [vmem:[%s245 + $0x8] sm:$0xff]
        %v248 = vadd.f32 %v243, %v246
        %v249 = vadd.f32 %v244, %v247
        %v250 = vrot.slane %v248, 7
        %v251 = vrot.slane %v249, 7
        %vm252 = vcmp.lt.s32.totalorder %v203, 1
        %v253 = vsel %vm252, %v250, %v251
        %v254 = vsel %vm252, %v251, %v250
        %v255 = vmul.f32 %v254, %v211
        %v256 = vmul.f32 %v253, %v212
        %v257 = vrot.slane %v248, 1
        %v258 = vrot.slane %v249, 1
        %vm259 = vcmp.lt.s32.totalorder %v203, 7
        %v260 = vsel %vm259, %v257, %v258
        %v261 = vsel %vm259, %v258, %v257
        %v262 = vmul.f32 %v260, %v217
        %v263 = vmul.f32 %v261, %v218
        %v264 = vmul.f32 %v248, 2.0
        %v265 = vmul.f32 %v249, 2.0
        %v266 = vadd.f32 %v255, %v264
        %v267 = vadd.f32 %v256, %v265
        %v268 = vadd.f32 %v266, %v262
        %v269 = vadd.f32 %v267, %v263
        %v270 = vsub.f32 %v255, %v262
        %v271 = vsub.f32 %v256, %v263
        %272 = vrot.lane.b32.xlu0 %v268, 1
        %v273 = vpop.permute.xlu0 %272
        %274 = vrot.lane.b32.xlu0 %v269, 1
        %v275 = vpop.permute.xlu0 %274
        %276 = vrot.lane.b32.xlu0 %v268, 127
        %v277 = vpop.permute.xlu0 %276
        %278 = vrot.lane.b32.xlu0 %v269, 127
        %v279 = vpop.permute.xlu0 %278
        %280 = vrot.lane.b32.xlu0 %v270, 1
        %v281 = vpop.permute.xlu0 %280
        %282 = vrot.lane.b32.xlu0 %v271, 1
        %v283 = vpop.permute.xlu0 %282
        %284 = vrot.lane.b32.xlu0 %v270, 127
        %v285 = vpop.permute.xlu0 %284
        %286 = vrot.lane.b32.xlu0 %v271, 127
        %v287 = vpop.permute.xlu0 %286
        %v288 = vmul.f32 %v273, %v221
        %v289 = vmul.f32 %v275, %v221
        %v290 = vmul.f32 %v277, %v224
        %v291 = vmul.f32 %v279, %v224
        %v292 = vsub.f32 %v288, %v290
        %v293 = vsub.f32 %v289, %v291
        %v294 = vmul.f32 %v281, %v221
        %v295 = vmul.f32 %v283, %v221
        %v296 = vmul.f32 %v270, 2.0
        %v297 = vmul.f32 %v271, 2.0
        %v298 = vadd.f32 %v294, %v296
        %v299 = vadd.f32 %v295, %v297
        %v300 = vmul.f32 %v285, %v224
        %v301 = vmul.f32 %v287, %v224
        %v302 = vadd.f32 %v298, %v300
        %v303 = vadd.f32 %v299, %v301
        %304 = vadd.xlane.f32.xlu0 %v302
        %v305 = vpop.xlane.xlu0 %304
        %306 = vadd.xlane.f32.xlu0 %v303
        %v307 = vpop.xlane.xlu0 %306
        %308 = vadd.xlane.f32.xlu0 %v292
        %v309 = vpop.xlane.xlu0 %308
        %310 = vadd.xlane.f32.xlu0 %v293
        %v311 = vpop.xlane.xlu0 %310
        %v312 = vmul.f32 %v302, %v302
        %v313 = vmul.f32 %v303, %v303
        %314 = vadd.xlane.f32.xlu0 %v312
        %v315 = vpop.xlane.xlu0 %314
        %316 = vadd.xlane.f32.xlu0 %v313
        %v317 = vpop.xlane.xlu0 %316
        %v318 = vmul.f32 %v292, %v292
        %v319 = vmul.f32 %v293, %v293
        %320 = vadd.xlane.f32.xlu0 %v318
        %v321 = vpop.xlane.xlu0 %320
        %322 = vadd.xlane.f32.xlu0 %v319
        %v323 = vpop.xlane.xlu0 %322
        %vm324 = vcmask 7168
        %v325 = vsel %vm324, %v305, %v309
        %v326 = vsel %vm324, %v307, %v311
        %vm327 = vcmask 15360
        %v328 = vsel %vm327, %v325, %v315
        %v329 = vsel %vm327, %v326, %v317
        %vm330 = vcmask 23552
        %v331 = vsel %vm330, %v328, %v321
        %v332 = vsel %vm330, %v329, %v323
        %vm333 = vcmask 130048
        %v335 = vsel %vm333, %v232, 0
        %337 = vmatprep.subr.mxu0 0.0
        %338 = vmatpush1.msra.mxu0 %v331
        %339 = vmatprep.subr.mxu0 0.0
        %340 = vmatpush1.msra.mxu0 %v332
        %341 = vmatprep.subr.mxu0 0.0
        %342 = vmatpush1.msra.mxu0 0.0
        %343 = vmatprep.subr.mxu0 0.0
        %344 = vmatpush1.msra.mxu0 0.0
        %345 = vmatprep.subr.mxu0 0.0
        %346 = vmatpush1.msra.mxu0 0.0
        %347 = vmatprep.subr.mxu0 0.0
        %348 = vmatpush1.msra.mxu0 0.0
        %349 = vmatprep.subr.mxu0 0.0
        %350 = vmatpush1.msra.mxu0 0.0
        %351 = vmatprep.subr.mxu0 0.0
        %352 = vmatpush1.msra.mxu0 0.0
        %353 = vmatprep.subr.mxu0 0.0
        %354 = vmatpush1.msra.mxu0 0.0
        %355 = vmatprep.subr.mxu0 0.0
        %356 = vmatpush1.msra.mxu0 0.0
        %357 = vmatprep.subr.mxu0 0.0
        %358 = vmatpush1.msra.mxu0 0.0
        %359 = vmatprep.subr.mxu0 0.0
        %360 = vmatpush1.msra.mxu0 0.0
        %361 = vmatprep.subr.mxu0 0.0
        %362 = vmatpush1.msra.mxu0 0.0
        %363 = vmatprep.subr.mxu0 0.0
        %364 = vmatpush1.msra.mxu0 0.0
        %365 = vmatprep.subr.mxu0 0.0
        %366 = vmatpush1.msra.mxu0 0.0
        %367 = vmatprep.subr.mxu0 0.0
        %368 = vmatpush1.msra.mxu0 0.0
        %369 = vmatprep.subr.mxu0 0.0
        %370 = vmatpush1.msra.mxu0 0.0
        %371 = vmatprep.subr.mxu0 0.0
        %372 = vmatpush1.msra.mxu0 0.0
        %373 = vmatprep.subr.mxu0 0.0
        %374 = vmatpush1.msra.mxu0 0.0
        %375 = vmatprep.subr.mxu0 0.0
        %376 = vmatpush1.msra.mxu0 0.0
        %377 = vmatprep.subr.mxu0 0.0
        %378 = vmatpush1.msra.mxu0 0.0
        %379 = vmatprep.subr.mxu0 0.0
        %380 = vmatpush1.msra.mxu0 0.0
        %381 = vmatprep.subr.mxu0 0.0
        %382 = vmatpush1.msra.mxu0 0.0
        %383 = vmatprep.subr.mxu0 0.0
        %384 = vmatpush1.msra.mxu0 0.0
        %385 = vmatprep.subr.mxu0 0.0
        %386 = vmatpush1.msra.mxu0 0.0
        %387 = vmatprep.subr.mxu0 0.0
        %388 = vmatpush1.msra.mxu0 0.0
        %389 = vmatprep.subr.mxu0 0.0
        %390 = vmatpush1.msra.mxu0 0.0
        %391 = vmatprep.subr.mxu0 0.0
        %392 = vmatpush1.msra.mxu0 0.0
        %393 = vmatprep.subr.mxu0 0.0
        %394 = vmatpush1.msra.mxu0 0.0
        %395 = vmatprep.subr.mxu0 0.0
        %396 = vmatpush1.msra.mxu0 0.0
        %397 = vmatprep.subr.mxu0 0.0
        %398 = vmatpush1.msra.mxu0 0.0
        %399 = vmatprep.subr.mxu0 0.0
        %400 = vmatpush1.msra.mxu0 0.0
        %401 = vmatprep.mubr.f32.mxu0 0.0
        %402 = vmatmul.mubr.f32.gmra.mrb[0].mxu0 %v335
        %v403 = vpop.f32.mrb[0].mxu0
        %v404 = vadd.f32 0.0, %v403
        %v405 = vpop.f32.mrb[0].mxu0
        %406 = vdwg.mxu0
        %v407 = vld [vmem:[%s173] sm:$0xff]
        %v408 = vld [vmem:[%s173 + $0x8] sm:$0xff]
        %s409 = scalar_lea.vmem %s173, 16 [#allocation4]
        %v410 = vld [vmem:[%s409] sm:$0xff]
        %v411 = vld [vmem:[%s409 + $0x8] sm:$0xff]
        %v412 = vadd.f32 %v407, %v410
        %v413 = vadd.f32 %v408, %v411
        %s414 = scalar_lea.vmem %s173, 32 [#allocation4]
        %v415 = vld [vmem:[%s414] sm:$0xff]
        %v416 = vld [vmem:[%s414 + $0x8] sm:$0xff]
        %v417 = vadd.f32 %v412, %v415
        %v418 = vadd.f32 %v413, %v416
        %s419 = scalar_lea.vmem %s173, 48 [#allocation4]
        %v420 = vld [vmem:[%s419] sm:$0xff]
        %v421 = vld [vmem:[%s419 + $0x8] sm:$0xff]
        %v422 = vadd.f32 %v417, %v420
        %v423 = vadd.f32 %v418, %v421
        %v424 = vrot.slane %v422, 7
        %v425 = vrot.slane %v423, 7
        %v426 = vsel %vm252, %v424, %v425
        %v427 = vsel %vm252, %v425, %v424
        %v428 = vmul.f32 %v427, %v211
        %v429 = vmul.f32 %v426, %v212
        %v430 = vrot.slane %v422, 1
        %v431 = vrot.slane %v423, 1
        %v432 = vsel %vm259, %v430, %v431
        %v433 = vsel %vm259, %v431, %v430
        %v434 = vmul.f32 %v432, %v217
        %v435 = vmul.f32 %v433, %v218
        %v436 = vmul.f32 %v422, 2.0
        %v437 = vmul.f32 %v423, 2.0
        %v438 = vadd.f32 %v428, %v436
        %v439 = vadd.f32 %v429, %v437
        %v440 = vadd.f32 %v438, %v434
        %v441 = vadd.f32 %v439, %v435
        %v442 = vsub.f32 %v428, %v434
        %v443 = vsub.f32 %v429, %v435
        %444 = vrot.lane.b32.xlu0 %v440, 1
        %v445 = vpop.permute.xlu0 %444
        %446 = vrot.lane.b32.xlu0 %v441, 1
        %v447 = vpop.permute.xlu0 %446
        %448 = vrot.lane.b32.xlu0 %v440, 127
        %v449 = vpop.permute.xlu0 %448
        %450 = vrot.lane.b32.xlu0 %v441, 127
        %v451 = vpop.permute.xlu0 %450
        %452 = vrot.lane.b32.xlu0 %v442, 1
        %v453 = vpop.permute.xlu0 %452
        %454 = vrot.lane.b32.xlu0 %v443, 1
        %v455 = vpop.permute.xlu0 %454
        %456 = vrot.lane.b32.xlu0 %v442, 127
        %v457 = vpop.permute.xlu0 %456
        %458 = vrot.lane.b32.xlu0 %v443, 127
        %v459 = vpop.permute.xlu0 %458
        %v460 = vmul.f32 %v445, %v221
        %v461 = vmul.f32 %v447, %v221
        %v462 = vmul.f32 %v449, %v224
        %v463 = vmul.f32 %v451, %v224
        %v464 = vsub.f32 %v460, %v462
        %v465 = vsub.f32 %v461, %v463
        %v466 = vmul.f32 %v453, %v221
        %v467 = vmul.f32 %v455, %v221
        %v468 = vmul.f32 %v442, 2.0
        %v469 = vmul.f32 %v443, 2.0
        %v470 = vadd.f32 %v466, %v468
        %v471 = vadd.f32 %v467, %v469
        %v472 = vmul.f32 %v457, %v224
        %v473 = vmul.f32 %v459, %v224
        %v474 = vadd.f32 %v470, %v472
        %v475 = vadd.f32 %v471, %v473
        %476 = vadd.xlane.f32.xlu0 %v474
        %v477 = vpop.xlane.xlu0 %476
        %478 = vadd.xlane.f32.xlu0 %v475
        %v479 = vpop.xlane.xlu0 %478
        %480 = vadd.xlane.f32.xlu0 %v464
        %v481 = vpop.xlane.xlu0 %480
        %482 = vadd.xlane.f32.xlu0 %v465
        %v483 = vpop.xlane.xlu0 %482
        %v484 = vmul.f32 %v474, %v474
        %v485 = vmul.f32 %v475, %v475
        %486 = vadd.xlane.f32.xlu0 %v484
        %v487 = vpop.xlane.xlu0 %486
        %488 = vadd.xlane.f32.xlu0 %v485
        %v489 = vpop.xlane.xlu0 %488
        %v490 = vmul.f32 %v464, %v464
        %v491 = vmul.f32 %v465, %v465
        %492 = vadd.xlane.f32.xlu0 %v490
        %v493 = vpop.xlane.xlu0 %492
        %494 = vadd.xlane.f32.xlu0 %v491
        %v495 = vpop.xlane.xlu0 %494
        %v496 = vsel %vm324, %v477, %v481
        %v497 = vsel %vm324, %v479, %v483
        %v498 = vsel %vm327, %v496, %v487
        %v499 = vsel %vm327, %v497, %v489
        %v500 = vsel %vm330, %v498, %v493
        %v501 = vsel %vm330, %v499, %v495
        %502 = vmatprep.subr.mxu0 0.0
        %503 = vmatpush1.msra.mxu0 %v500
        %504 = vmatprep.subr.mxu0 0.0
        %505 = vmatpush1.msra.mxu0 %v501
        %506 = vmatprep.subr.mxu0 0.0
        %507 = vmatpush1.msra.mxu0 0.0
        %508 = vmatprep.subr.mxu0 0.0
        %509 = vmatpush1.msra.mxu0 0.0
        %510 = vmatprep.subr.mxu0 0.0
        %511 = vmatpush1.msra.mxu0 0.0
        %512 = vmatprep.subr.mxu0 0.0
        %513 = vmatpush1.msra.mxu0 0.0
        %514 = vmatprep.subr.mxu0 0.0
        %515 = vmatpush1.msra.mxu0 0.0
        %516 = vmatprep.subr.mxu0 0.0
        %517 = vmatpush1.msra.mxu0 0.0
        %518 = vmatprep.subr.mxu0 0.0
        %519 = vmatpush1.msra.mxu0 0.0
        %520 = vmatprep.subr.mxu0 0.0
        %521 = vmatpush1.msra.mxu0 0.0
        %522 = vmatprep.subr.mxu0 0.0
        %523 = vmatpush1.msra.mxu0 0.0
        %524 = vmatprep.subr.mxu0 0.0
        %525 = vmatpush1.msra.mxu0 0.0
        %526 = vmatprep.subr.mxu0 0.0
        %527 = vmatpush1.msra.mxu0 0.0
        %528 = vmatprep.subr.mxu0 0.0
        %529 = vmatpush1.msra.mxu0 0.0
        %530 = vmatprep.subr.mxu0 0.0
        %531 = vmatpush1.msra.mxu0 0.0
        %532 = vmatprep.subr.mxu0 0.0
        %533 = vmatpush1.msra.mxu0 0.0
        %534 = vmatprep.subr.mxu0 0.0
        %535 = vmatpush1.msra.mxu0 0.0
        %536 = vmatprep.subr.mxu0 0.0
        %537 = vmatpush1.msra.mxu0 0.0
        %538 = vmatprep.subr.mxu0 0.0
        %539 = vmatpush1.msra.mxu0 0.0
        %540 = vmatprep.subr.mxu0 0.0
        %541 = vmatpush1.msra.mxu0 0.0
        %542 = vmatprep.subr.mxu0 0.0
        %543 = vmatpush1.msra.mxu0 0.0
        %544 = vmatprep.subr.mxu0 0.0
        %545 = vmatpush1.msra.mxu0 0.0
        %546 = vmatprep.subr.mxu0 0.0
        %547 = vmatpush1.msra.mxu0 0.0
        %548 = vmatprep.subr.mxu0 0.0
        %549 = vmatpush1.msra.mxu0 0.0
        %550 = vmatprep.subr.mxu0 0.0
        %551 = vmatpush1.msra.mxu0 0.0
        %552 = vmatprep.subr.mxu0 0.0
        %553 = vmatpush1.msra.mxu0 0.0
        %554 = vmatprep.subr.mxu0 0.0
        %555 = vmatpush1.msra.mxu0 0.0
        %556 = vmatprep.subr.mxu0 0.0
        %557 = vmatpush1.msra.mxu0 0.0
        %558 = vmatprep.subr.mxu0 0.0
        %559 = vmatpush1.msra.mxu0 0.0
        %560 = vmatprep.subr.mxu0 0.0
        %561 = vmatpush1.msra.mxu0 0.0
        %562 = vmatprep.subr.mxu0 0.0
        %563 = vmatpush1.msra.mxu0 0.0
        %564 = vmatprep.subr.mxu0 0.0
        %565 = vmatpush1.msra.mxu0 0.0
        %566 = vmatprep.mubr.f32.mxu0 0.0
        %567 = vmatmul.mubr.f32.gmra.mrb[0].mxu0 %v335
        %v568 = vpop.f32.mrb[0].mxu0
        %v569 = vadd.f32 0.0, %v568
        %v570 = vpop.f32.mrb[0].mxu0
        %571 = vdwg.mxu0
        %v572 = vmul.f32 %v404, %v569
        %v573 = vrsqrt.pop %v404
        %v574 = vmul.f32 %v404, %v573
        %vm575 = vcmp.eq.f32.partialorder %v404, inf
        %v576 = vsel %vm575, %v404, %v574
        %vm577 = vcmp.eq.f32.partialorder %v404, 0.0
        %v578 = vand.u32 %v404, 2147483648
        %v579 = vsel %vm577, %v578, %v576
        %v580 = vrsqrt.pop %v569
        %v581 = vmul.f32 %v569, %v580
        %vm582 = vcmp.eq.f32.partialorder %v569, inf
        %v583 = vsel %vm582, %v569, %v581
        %vm584 = vcmp.eq.f32.partialorder %v569, 0.0
        %v585 = vand.u32 %v569, 2147483648
        %v586 = vsel %vm584, %v585, %v583
        %v587 = vmul.f32 %v579, %v586
        %589 = vrot.lane.b32.xlu0 %v587, 126
        %v590 = vpop.permute.xlu0 %589
        %v592 = vrcp.pop %v590
        %v593 = vmul.f32 %v572, %v592
        %vm594 = vcmask 11264
        %595 = vst.msk [vmem:[%s201] sm:$0xf] %vm594, %v593
        %p596 = scmp.lt.s32.totalorder %s19, 1
        %s597 = scalar_select %p596, %s19, 1
        %s598 = smul.addr %s597, 4
        %s599 = scalar_lea.vmem %s2, %s598
        // Predicated region
        $region37: #{full_normal_loss.1} parent=27 // pred_check
          %p600 = pneg %p89
        $region38: #{full_normal_loss.1} parent=27 // pred_check_branch
          %602 = sbr.rel (%p600) target = $region40
        $region39: #{full_normal_loss.1} parent=27 // pred_region
          _
        $region40: #{full_normal_loss.1} parent=27 // pred_fallthru
          _
      $region28: #{full_normal_loss.1} parent=5 // pred_fallthru
        _
      %p603 = scmp.le.s32.totalorder 2, %s14
      // Predicated region
      $region41: #{full_normal_loss.1} parent=5 // pred_check
        %p604 = pneg %p603
      $region42: #{full_normal_loss.1} parent=5 // pred_check_branch
        %606 = sbr.rel (%p604) target = $region44
      $region43: #{full_normal_loss.1} parent=5 // pred_region
        %s607 = ssub.s32 %s14, 2
        // Predicated region
        $region45: #{full_normal_loss.1} parent=43 // pred_check
          %p608 = pneg %p95
        $region46: #{full_normal_loss.1} parent=43 // pred_check_branch
          %610 = sbr.rel (%p608) target = $region48
        $region47: #{full_normal_loss.1} parent=43 // pred_region
          %p611 = scmp.lt.s32.totalorder %s20, 1
          %s612 = scalar_select %p611, %s20, 1
          %s613 = smul.addr %s612, 4
          %s614 = scalar_lea.vmem %s2, %s613
        $region48: #{full_normal_loss.1} parent=43 // pred_fallthru
          _
      $region44: #{full_normal_loss.1} parent=5 // pred_fallthru
        _
    $region6: #{full_normal_loss.1} parent=1 // loop_footer
      %s18 = sadd.s32 1, %s14
    $region7: #{full_normal_loss.1} parent=1 // loop_footer_branch
      %13 = sbr.rel target = $region3
    $region8: #{full_normal_loss.1} parent=1 // loop_exit
      _
    %615 = vsyncpa [#allocation3], 1
    %s616 = scalar_lea.sflag [#allocation3], 1
    %617 = vsyncpa %s616, 1
    %618 = vsyncpa [#allocation5], 1
    %s619 = scalar_lea.sflag [#allocation5], 1
    %620 = vsyncpa %s619, 1

</llo_original>
